<compile_context>
chip_gen: v5e
topology: v5e:2x2
jax: 0.10.0
libtpu: 0.0.40
codegen_flags: <defaults>
</compile_context>

<pallas_src>
import jax
import jax.numpy as jnp
from jax.experimental import pallas as pl
from jax.experimental.pallas import tpu as pltpu


def _round_up(x, m):
    return ((x + m - 1) // m) * m


def _pad2(a, rows, cols):
    """Zero-pad a 2-D array up to (rows, cols); no-op if already that shape."""
    r, c = a.shape
    if r == rows and c == cols:
        return a
    return jnp.pad(a, ((0, rows - r), (0, cols - c)))


def _fused_ae_kernel(x_ref, wenc_ref, wdec_ref, out_ref):
    """out = (x @ enc_w^T) @ dec_w^T, two MXU matmuls, f32 accumulation.

    The (block_batch, e_pad) intermediate lives only in registers/VMEM for the
    duration of the tile; it is cast back to the working dtype before the
    second matmul (matching the PyTorch layer-by-layer dtype behaviour).
    """
    emb = jnp.dot(x_ref[...], wenc_ref[...], preferred_element_type=jnp.float32)
    out_ref[...] = jnp.dot(
        emb.astype(wdec_ref.dtype), wdec_ref[...], preferred_element_type=jnp.float32
    ).astype(out_ref.dtype)


def _folded_ae_kernel(x_ref, w_ref, out_ref):
    """out = x @ W where W = enc_w^T @ dec_w^T was folded at trace time."""
    out_ref[...] = jnp.dot(
        x_ref[...], w_ref[...], preferred_element_type=jnp.float32
    ).astype(out_ref.dtype)


def test_autoencoder_forward(x, enc_w, dec_w, *, tiny_fallback=False):
    """Forward pass of `_TestAutoencoder`: (x @ enc_w^T) @ dec_w^T.

    enc_w: (embedding_dim, input_dim)  -- PyTorch nn.Linear layout
    dec_w: (input_dim, embedding_dim)
    """
    batch, input_dim = x.shape
    embedding_dim = enc_w.shape[0]
    dtype = x.dtype
    itemsize = jnp.dtype(dtype).itemsize

    # Optional escape hatch: for truly tiny problems the pad + launch + slice
    # round-trips dwarf the matmul.  Off by default so the Pallas path is
    # always exercised.
    if tiny_fallback and batch * input_dim <= 4096:
        return (x @ enc_w.T) @ dec_w.T

    # Lane-dense padding: feature dims -> multiples of 128 lanes (unmasked vst).
    d_pad = _round_up(input_dim, 128)
    e_pad = _round_up(embedding_dim, 128)
    # Sub-32-bit dtypes pack 2/4 rows per sublane -> pad batch accordingly.
    sublane = max(8, 32 // itemsize)

    # Fold the two Linears only when it does NOT inflate FLOPs / weight bytes:
    # folded cost per row ~ d_pad^2 vs fused ~ 2*d_pad*e_pad.
    use_fold = d_pad <= 2 * e_pad

    if use_fold:
        # f32 accumulation for the fold so rounding error does not compound
        # through the d_pad-long inner product.
        w = jnp.dot(enc_w.T, dec_w.T, preferred_element_type=jnp.float32).astype(dtype)
        weights = (_pad2(w, d_pad, d_pad),)
        weight_bytes = d_pad * d_pad * itemsize
        kernel = _folded_ae_kernel
        flops_per_row = 2 * d_pad * d_pad
    else:
        weights = (
            _pad2(enc_w.T.astype(dtype), d_pad, e_pad),  # (d_pad, e_pad)
            _pad2(dec_w.T.astype(dtype), e_pad, d_pad),  # (e_pad, d_pad)
        )
        weight_bytes = 2 * d_pad * e_pad * itemsize
        kernel = _fused_ae_kernel
        flops_per_row = 4 * d_pad * e_pad

    # Batch tile targeting ~2 MiB per x tile, aligned to 256 rows (covers both
    # the v5e 4x128^2 and v6e/v7x 2x256^2 MXU shapes), clamped to [256, 1024].
    target_rows = (2 << 20) // max(1, d_pad * itemsize)
    block_batch = min(1024, max(256, _round_up(target_rows, 256)))
    # Avoid gross padding waste: shrink to a tile that divides the 256-padded batch.
    b256 = _round_up(batch, 256)
    while block_batch > 256 and b256 % block_batch != 0:
        block_batch -= 256

    total_bytes = 2 * batch * d_pad * itemsize + weight_bytes  # x in + out + weights

    if batch <= block_batch:
        # Small case: single block, NO grid -> no per-step pipeline overhead.
        b_pad = _round_up(batch, sublane)
        x_p = _pad2(x, b_pad, d_pad)
        out_p = pl.pallas_call(
            kernel,
            out_shape=jax.ShapeDtypeStruct((b_pad, d_pad), dtype),
            cost_estimate=pl.CostEstimate(
                flops=b_pad * flops_per_row,
                transcendentals=0,
                bytes_accessed=total_bytes,
            ),
        )(x_p, *weights)
        return out_p[:batch, :input_dim]

    # Large batch: tile the batch axis; constant weights stay resident in VMEM.
    b_pad = _round_up(batch, block_batch)
    x_p = _pad2(x, b_pad, d_pad)
    grid = (b_pad // block_batch,)

    def _run(single_buffer_weights):
        if single_buffer_weights:
            # Constant index_map (0, 0) -> one VMEM copy is enough; halves the
            # weight VMEM footprint vs. the default double-buffering.
            w_specs = [
                pl.BlockSpec(w.shape, lambda i: (0, 0), pipeline_mode=pl.Buffered(1))
                for w in weights
            ]
            weight_copies = 1
        else:
            w_specs = [pl.BlockSpec(w.shape, lambda i: (0, 0)) for w in weights]
            weight_copies = 2

        # VMEM budget: double-buffered x / out tiles + resident weights + the
        # fused-path f32 intermediate + headroom.
        needed = (
            4 * block_batch * d_pad * itemsize          # 2x x tile + 2x out tile
            + weight_copies * weight_bytes
            + block_batch * e_pad * 4                   # fused intermediate (f32)
            + (2 << 20)                                  # headroom
        )
        vmem_limit = int(min(64 << 20, max(needed, 16 << 20)))
        # TODO(synk): if `needed` exceeds ~64 MiB (huge input_dim AND huge
        # embedding_dim) add a K/N-tiled accumulator path (3-D grid + pl.when
        # init/finalize) instead of keeping the full weights resident.

        return pl.pallas_call(
            kernel,
            out_shape=jax.ShapeDtypeStruct((b_pad, d_pad), dtype),
            grid=grid,
            in_specs=[pl.BlockSpec((block_batch, d_pad), lambda i: (i, 0))] + w_specs,
            out_specs=pl.BlockSpec((block_batch, d_pad), lambda i: (i, 0)),
            compiler_params=pltpu.CompilerParams(
                # Batch steps are independent -> megacore/v7x can split them.
                dimension_semantics=("parallel",),
                vmem_limit_bytes=vmem_limit,
            ),
            cost_estimate=pl.CostEstimate(
                flops=b_pad * flops_per_row,
                transcendentals=0,
                bytes_accessed=total_bytes,
            ),
        )(x_p, *weights)

    try:
        out_p = _run(single_buffer_weights=True)
    except Exception:
        # Older Pallas without BlockSpec(pipeline_mode=...): fall back to the
        # default double-buffered weight spec (correct, slightly more VMEM).
        out_p = _run(single_buffer_weights=False)

    return out_p[:batch, :input_dim]


def make_params(input_dim, embedding_dim, dtype=jnp.float32):
    """Deterministic init matching the PyTorch module: all weights = 1."""
    enc_w = jnp.ones((embedding_dim, input_dim), dtype=dtype)  # nn.Linear layout
    dec_w = jnp.ones((input_dim, embedding_dim), dtype=dtype)
    return enc_w, dec_w


if __name__ == "__main__":
    # --- Case 1: tiny shape matching the clustpy unit-test scale -------------
    batch, input_dim, embedding_dim = 8, 32, 16
    key = jax.random.PRNGKey(0)
    x = jax.random.normal(key, (batch, input_dim), dtype=jnp.float32)
    enc_w, dec_w = make_params(input_dim, embedding_dim)

    out = jax.block_until_ready(test_autoencoder_forward(x, enc_w, dec_w))
    ref = (x @ enc_w.T) @ dec_w.T
    assert out.shape == (batch, input_dim)
    assert jnp.allclose(out, ref, rtol=1e-5, atol=1e-5), "mismatch vs reference (small)"

    # --- Case 2: MNIST-like low-rank autoencoder: exercises the fused
    #             two-matmul, batch-tiled, single-buffered-weight path --------
    batch2, input_dim2, embedding_dim2 = 1024, 784, 10
    x2 = jax.random.normal(jax.random.PRNGKey(0), (batch2, input_dim2), dtype=jnp.float32)
    enc_w2, dec_w2 = make_params(input_dim2, embedding_dim2)

    out2 = jax.block_until_ready(test_autoencoder_forward(x2, enc_w2, dec_w2))
    ref2 = (x2 @ enc_w2.T) @ dec_w2.T
    assert out2.shape == (batch2, input_dim2)
    assert jnp.allclose(out2, ref2, rtol=1e-4, atol=1e-2), "mismatch vs reference (large)"

    print("KERNEL_OK")
</pallas_src>

<mosaic_0001>
module attributes {stable_mosaic.version = 11 : i64} {
  func.func @_folded_ae_kernel(%arg0: memref<8x128xf32, #tpu.memory_space<vmem>>, %arg1: memref<128x128xf32, #tpu.memory_space<vmem>>, %arg2: memref<8x128xf32, #tpu.memory_space<vmem>>) attributes {dimension_semantics = [], scalar_prefetch = 0 : i64, scratch_operands = 0 : i64, tpu.core_type = #tpu.core_type<tc>} {
    %c0 = arith.constant 0 : index
    %c0_0 = arith.constant 0 : index
    %0 = vector.load %arg0[%c0, %c0_0] : memref<8x128xf32, #tpu.memory_space<vmem>>, vector<8x128xf32>
    %c0_1 = arith.constant 0 : index
    %c0_2 = arith.constant 0 : index
    %1 = vector.load %arg1[%c0_1, %c0_2] : memref<128x128xf32, #tpu.memory_space<vmem>>, vector<128x128xf32>
    %cst = arith.constant dense<0.000000e+00> : vector<8x128xf32>
    %2 = tpu.matmul %0, %1, %cst {dimension_numbers = #tpu.dot_dimension_numbers<[1], [0], [0], [1], [0, 0, 1, 1], [], []>} : vector<8x128xf32>, vector<128x128xf32>, vector<8x128xf32> -> vector<8x128xf32>
    %c0_3 = arith.constant 0 : index
    %c0_4 = arith.constant 0 : index
    %3 = vector.load %arg2[%c0_3, %c0_4] : memref<8x128xf32, #tpu.memory_space<vmem>>, vector<8x128xf32>
    tpu.vector_store %arg2[%c0_3, %c0_4], %2 {strides = array<i32>} : memref<8x128xf32, #tpu.memory_space<vmem>>, vector<8x128xf32>,
    return
  }
}

</mosaic_0001>

<llo_original>
// kernel: tpu_custom_call.1
$region0: #{tpu_custom_call.1}
  #allocation0 [shape = 'u32[]', space=smem, size = 0x4, offset = 0x4, fixed_abs, tag = 'smem constant byte address 0x4 - core index']
  #allocation1 [shape = 'u32[72,128]{1,0:T(1,128)}', space=vmem, size = 0x9000, scoped, tag = 'internal scratch']
  %s0 = inlined_call_operand.hbm [shape: f32[8,128], index: 0, kind: input, shape index: {}]
  %s1 = inlined_call_operand.hbm [shape: f32[128,128], index: 1, kind: input, shape index: {}]
  %s2 = inlined_call_operand.hbm [shape: f32[8,128], index: 2, kind: output, shape index: {}]
  %s3 = sld [smem:[#allocation0]]
  $region26: #{tpu_custom_call.1} parent=0
    _
  %s5 = ssub.s32 1, %s3
  %s6 = scalar_select 0, %s5, %s3
  $region1: #{tpu_custom_call.1} parent=0
    #allocation2 [shape = 'u8[4096]{0}', space=vmem, size = 0x1000, scoped, tag = 'input window, operand 0, single buffered']
    #allocation3 [shape = 's32[1]{0}', space=sflag, size = 0x4, scoped, tag = 'scoped memory for tpu_custom_call.1']
    #allocation4 [shape = 's32[1]{0}', space=sflag, size = 0x4, scoped, tag = 'scoped memory for tpu_custom_call.1']
    #allocation5 [shape = 'u8[65536]{0}', space=vmem, size = 0x10000, scoped, tag = 'input window, operand 1, single buffered']
    #allocation6 [shape = 's32[1]{0}', space=sflag, size = 0x4, scoped, tag = 'scoped memory for tpu_custom_call.1']
    #allocation7 [shape = 'u8[4096]{0}', space=vmem, size = 0x1000, scoped, tag = 'output window, operand 0, single buffered']
    %7 = vsyncpa [#allocation3], 0
    %8 = vsyncpa [#allocation6], 0
    %9 = vsyncpa [#allocation4], 0
    // Predicated region
    $region2: #{tpu_custom_call.1} parent=1 // pred_check
      _
    $region3: #{tpu_custom_call.1} parent=1 // pred_check_branch
      %11 = sbr.rel (0) target = $region5
    $region4: #{tpu_custom_call.1} parent=1 // pred_region
      %13 = vsyncadd [#allocation3], 0
      %s15 = sshll.u32 %s0, 4
      %s16 = int_to_ptr.hbm [resolvable:$true] %s15
      %s17 = sshll.u32 [#allocation2], 4
      %s18 = int_to_ptr.vmem [resolvable:$true] %s17
      %20 = dma.hbm_to_vmem [thread:$0]  %s16, 128, %s18, [#allocation3]
    $region5: #{tpu_custom_call.1} parent=1 // pred_fallthru
      _
    // Predicated region
    $region6: #{tpu_custom_call.1} parent=1 // pred_check
      _
    $region7: #{tpu_custom_call.1} parent=1 // pred_check_branch
      %22 = sbr.rel (0) target = $region9
    $region8: #{tpu_custom_call.1} parent=1 // pred_region
      %24 = vsyncadd [#allocation6], 0
      %s25 = sshll.u32 %s1, 4
      %s26 = int_to_ptr.hbm [resolvable:$true] %s25
      %s27 = sshll.u32 [#allocation5], 4
      %s28 = int_to_ptr.vmem [resolvable:$true] %s27
      %33 = dma.hbm_to_vmem [thread:$0]  %s26, 2048, %s28, [#allocation6], 128, 128, 8
    $region9: #{tpu_custom_call.1} parent=1 // pred_fallthru
      _
    // Predicated region
    $region10: #{tpu_custom_call.1} parent=1 // pred_check
      _
    $region11: #{tpu_custom_call.1} parent=1 // pred_check_branch
      %35 = sbr.rel (0) target = $region13
    $region12: #{tpu_custom_call.1} parent=1 // pred_region
      %37 = dma.done [#allocation3], 128
    $region13: #{tpu_custom_call.1} parent=1 // pred_fallthru
      _
    // Predicated region
    $region14: #{tpu_custom_call.1} parent=1 // pred_check
      _
    $region15: #{tpu_custom_call.1} parent=1 // pred_check_branch
      %39 = sbr.rel (0) target = $region17
    $region16: #{tpu_custom_call.1} parent=1 // pred_region
      %41 = dma.done [#allocation6], 2048
    $region17: #{tpu_custom_call.1} parent=1 // pred_fallthru
      _
    %v42 = vld [vmem:[#allocation2] sm:$0xff]
    %v43 = vld [vmem:[#allocation5] sm:$0xff]
    %v44 = vld [vmem:[#allocation5 + $0x8] sm:$0xff]
    %v45 = vld [vmem:[#allocation5 + $0x10] sm:$0xff]
    %v46 = vld [vmem:[#allocation5 + $0x18] sm:$0xff]
    %v47 = vld [vmem:[#allocation5 + $0x20] sm:$0xff]
    %v48 = vld [vmem:[#allocation5 + $0x28] sm:$0xff]
    %v49 = vld [vmem:[#allocation5 + $0x30] sm:$0xff]
    %v50 = vld [vmem:[#allocation5 + $0x38] sm:$0xff]
    %v51 = vld [vmem:[#allocation5 + $0x40] sm:$0xff]
    %v52 = vld [vmem:[#allocation5 + $0x48] sm:$0xff]
    %v53 = vld [vmem:[#allocation5 + $0x50] sm:$0xff]
    %v54 = vld [vmem:[#allocation5 + $0x58] sm:$0xff]
    %v55 = vld [vmem:[#allocation5 + $0x60] sm:$0xff]
    %v56 = vld [vmem:[#allocation5 + $0x68] sm:$0xff]
    %v57 = vld [vmem:[#allocation5 + $0x70] sm:$0xff]
    %v58 = vld [vmem:[#allocation5 + $0x78] sm:$0xff]
    %59 = vmatpush.msra.mxu0 %v58
    %60 = vmatpush.msra.mxu0 %v57
    %61 = vmatpush.msra.mxu0 %v56
    %62 = vmatpush.msra.mxu0 %v55
    %63 = vmatpush.msra.mxu0 %v54
    %64 = vmatpush.msra.mxu0 %v53
    %65 = vmatpush.msra.mxu0 %v52
    %66 = vmatpush.msra.mxu0 %v51
    %67 = vmatpush.msra.mxu0 %v50
    %68 = vmatpush.msra.mxu0 %v49
    %69 = vmatpush.msra.mxu0 %v48
    %70 = vmatpush.msra.mxu0 %v47
    %71 = vmatpush.msra.mxu0 %v46
    %72 = vmatpush.msra.mxu0 %v45
    %73 = vmatpush.msra.mxu0 %v44
    %74 = vmatpush.msra.mxu0 %v43
    %75 = vmatmul.f32.gmra.mxu0 %v42
    %v76 = vpop.f32.mrf.mxu0
    %v77 = vadd.f32 0.0, %v76
    %78 = vdwg.mxu0
    %79 = vst [vmem:[#allocation7] sm:$0xff] %v77
    // Predicated region
    $region18: #{tpu_custom_call.1} parent=1 // pred_check
      _
    $region19: #{tpu_custom_call.1} parent=1 // pred_check_branch
      %81 = sbr.rel (0) target = $region21
    $region20: #{tpu_custom_call.1} parent=1 // pred_region
      %83 = vsyncadd [#allocation4], 0
      %s85 = sshll.u32 [#allocation7], 4
      %s86 = int_to_ptr.vmem [resolvable:$true] %s85
      %s87 = sshll.u32 %s2, 4
      %s88 = int_to_ptr.hbm [resolvable:$true] %s87
      %90 = dma.vmem_to_hbm [thread:$0]  %s86, 128, %s88, [#allocation4]
    $region21: #{tpu_custom_call.1} parent=1 // pred_fallthru
      _
    // Predicated region
    $region22: #{tpu_custom_call.1} parent=1 // pred_check
      _
    $region23: #{tpu_custom_call.1} parent=1 // pred_check_branch
      %92 = sbr.rel (0) target = $region25
    $region24: #{tpu_custom_call.1} parent=1 // pred_region
      %94 = dma.done [#allocation4], 128
    $region25: #{tpu_custom_call.1} parent=1 // pred_fallthru
      _
    %95 = vsyncpa [#allocation3], 1
    %96 = vsyncpa [#allocation6], 1
    %97 = vsyncpa [#allocation4], 1

</llo_original>
